<compile_context>
chip_gen: v7x
topology: tpu7x:2x2x1
jax: 0.10.0
libtpu: 0.0.40
codegen_flags: <defaults>
</compile_context>

<pallas_src>
import functools

import jax
import jax.numpy as jnp
from jax import lax
from jax.experimental import pallas as pl
from jax.experimental.pallas import tpu as pltpu


def _round_up(x, m):
    return (x + m - 1) // m * m


def _vmem_limit_bytes():
    """Per-generation scoped-VMEM limit with headroom for compiler scratch."""
    try:
        info = pltpu.get_tpu_info()
        cap = getattr(info, "vmem_capacity_bytes", None)
        if cap:
            # Leave ~25% headroom; cap well below v5e/v6e physical VMEM.
            return int(min(cap * 3 // 4, 96 * 1024 * 1024))
    except Exception:
        pass
    return None  # fall back to the compiler default


def _bgat_kernel(h1_ref, h2_ref, adj_ref, w1e_ref, w2e_ref, hp1_ref, hp2_ref,
                 *, alpha, out_features, concat):
    f = out_features
    f32 = jnp.float32
    mxu_dt = h1_ref.dtype
    to_mxu = (lambda x: x) if mxu_dt == f32 else (lambda x: x.astype(mxu_dt))

    # ---- Input projections (MXU).  Column `f` of the padded weight matrices
    # holds W @ a, so the attention-score projections ride along in the same
    # matmul pass.  Operands arrive already in the MXU dtype; accumulate f32.
    wh1e = jnp.dot(h1_ref[...], w1e_ref[...], preferred_element_type=f32)  # (N1, Fp)
    wh2e = jnp.dot(h2_ref[...], w2e_ref[...], preferred_element_type=f32)  # (N2, Fp)

    # ---- Attention logits (elementwise work stays in f32 on all generations).
    s1 = wh1e[:, f:f + 1]                      # (N1, 1)
    s2 = jnp.transpose(wh2e[:, f:f + 1])       # (1, N2) tiny relayout
    e = s1 + s2                                # (N1, N2)
    e = jnp.where(e > 0, e, alpha * e)         # LeakyReLU
    mask = adj_ref[...].astype(f32) > 0.0      # adj is int8 {0, 1}
    att = jnp.where(mask, e, f32(-9000000000000000.0))

    # ---- Row softmax (dim=1) -> h_prime2.  Fully consumed before the column
    # path so at most two (N1,N2) f32 tiles are live at any point.
    m1 = jnp.max(att, axis=1, keepdims=True)
    ex1 = jnp.exp(att - m1)                                       # (N1, N2)
    inv_l1 = 1.0 / jnp.sum(ex1, axis=1, keepdims=True)            # exact; (N1,1)
    # h_prime2 = softmax(att,1).T @ Wh1: contraction on axis 0 of both operands
    # (no explicit transpose of the (N1,N2) tile); row normalisation folded
    # into the small (N1,Fp) tile.  MXU dtype (bf16 on v6e/v7x), f32 accumulate.
    # TODO(synk): confirm via bundle dump that this form avoids an XLU
    #             transpose of the (N1,N2) tile on all generations.
    hp2 = lax.dot_general(to_mxu(ex1), to_mxu(wh1e * inv_l1),
                          (((0,), (0,)), ((), ())),
                          preferred_element_type=f32)             # (N2, Fp)

    # ---- Column softmax (dim=0) -> h_prime1.  Normalisation folded into the
    # small (N2,Fp) wh2e tile instead of scaling the (N1,N2) attention tile.
    m0 = jnp.max(att, axis=0, keepdims=True)
    ex0 = jnp.exp(att - m0)                                       # (N1, N2)
    inv_l0 = jnp.transpose(1.0 / jnp.sum(ex0, axis=0, keepdims=True))  # (N2, 1)
    hp1 = jnp.dot(to_mxu(ex0), to_mxu(wh2e * inv_l0),
                  preferred_element_type=f32)                     # (N1, Fp)

    if concat:
        # ELU; clamp the exp argument so the discarded branch cannot overflow.
        elu = lambda x: jnp.where(x > 0, x, jnp.exp(jnp.minimum(x, 0.0)) - 1.0)
        hp1 = elu(hp1)
        hp2 = elu(hp2)
    # Columns >= out_features (fused score column + lane padding) are junk /
    # zero and are sliced off by the wrapper -- never read them here.
    hp1_ref[...] = hp1
    hp2_ref[...] = hp2


def prepare_bgat_weights(W1, W2, a, *, mxu_dtype=jnp.bfloat16):
    """Pad/fuse the parameters once; reuse across forward calls.

    Column F of each padded weight matrix carries W @ a (computed in f32 and
    rounded once), so the attention-score projection is fused into the input
    projection matmul inside the kernel.  Padded rows/cols are zero.
    """
    IN1, F = W1.shape
    IN2, F2 = W2.shape
    assert F2 == F and a.shape == (2 * F, 1)
    Fp = _round_up(F + 1, 128)   # lane-dense matmul width (+1 score column)
    K1 = _round_up(IN1, 128)
    K2 = _round_up(IN2, 128)
    W1 = W1.astype(jnp.float32)
    W2 = W2.astype(jnp.float32)
    a = a.astype(jnp.float32)
    W1e = (jnp.zeros((K1, Fp), jnp.float32)
           .at[:IN1, :F].set(W1)
           .at[:IN1, F:F + 1].set(W1 @ a[:F, :]))
    W2e = (jnp.zeros((K2, Fp), jnp.float32)
           .at[:IN2, :F].set(W2)
           .at[:IN2, F:F + 1].set(W2 @ a[F:, :]))
    return W1e.astype(mxu_dtype), W2e.astype(mxu_dtype), F


def bgraph_attention_forward(h1, h2, adj, weights, *, alpha=0.2, concat=True):
    """Pallas implementation of BGraphAttentionLayer.forward."""
    W1e, W2e, F = weights
    mxu_dtype = W1e.dtype
    N1, IN1 = h1.shape
    N2, IN2 = h2.shape
    K1, Fp = W1e.shape
    K2, _ = W2e.shape
    assert adj.shape == (N1, N2)
    assert IN1 <= K1 and IN2 <= K2 and W2e.shape[1] == Fp

    # Host-side pad + cast in one fused op: operands reach the kernel already
    # in the MXU dtype (halves HBM DMA / VMEM on the bf16 path; no in-kernel
    # cast pass).
    # TODO(synk): for large IN, avoid materialising the K-padded copies by
    #             passing unpadded h and padding in-kernel once small-K
    #             matmuls are verified on all target generations.
    h1p = jnp.zeros((N1, K1), mxu_dtype).at[:, :IN1].set(h1.astype(mxu_dtype))
    h2p = jnp.zeros((N2, K2), mxu_dtype).at[:, :IN2].set(h2.astype(mxu_dtype))
    # adj only feeds `adj > 0`; ship it as int8 (4x less HBM/VMEM than f32 --
    # it is the largest input for big graphs).
    adj_i8 = (adj > 0).astype(jnp.int8)

    vmem = pl.BlockSpec(memory_space=pltpu.MemorySpace.VMEM)

    flops = 2.0 * (N1 * K1 * Fp + N2 * K2 * Fp + 2.0 * N1 * N2 * Fp)
    transcendentals = 2 * N1 * N2 + N1 * Fp + N2 * Fp
    bytes_accessed = (h1p.size * h1p.dtype.itemsize
                      + h2p.size * h2p.dtype.itemsize
                      + adj_i8.size
                      + W1e.size * W1e.dtype.itemsize
                      + W2e.size * W2e.dtype.itemsize
                      + 4 * (N1 * Fp + N2 * Fp))
    cost = pl.CostEstimate(flops=int(flops),
                           transcendentals=int(transcendentals),
                           bytes_accessed=int(bytes_accessed))

    hp1, hp2 = pl.pallas_call(
        functools.partial(_bgat_kernel, alpha=float(alpha), out_features=F,
                          concat=bool(concat)),
        out_shape=(jax.ShapeDtypeStruct((N1, Fp), jnp.float32),
                   jax.ShapeDtypeStruct((N2, Fp), jnp.float32)),
        in_specs=[vmem, vmem, vmem, vmem, vmem],
        out_specs=(vmem, vmem),
        compiler_params=pltpu.CompilerParams(vmem_limit_bytes=_vmem_limit_bytes()),
        cost_estimate=cost,
    )(h1p, h2p, adj_i8, W1e, W2e)

    # Strip the fused-score / lane-padding columns.
    return hp1[:, :F], hp2[:, :F]


def _xavier_uniform(key, shape, gain=1.414):
    fan_in, fan_out = shape[0], shape[1]
    limit = gain * jnp.sqrt(6.0 / (fan_in + fan_out))
    return jax.random.uniform(key, shape, jnp.float32, -limit, limit)


def _reference_forward(h1, h2, adj, W1, W2, a, alpha):
    """Pure-JAX reference mirroring the PyTorch code (concat=True), computed
    with precision=HIGHEST matmuls so it is a true f32 baseline."""
    mm = functools.partial(jnp.dot, precision=lax.Precision.HIGHEST)
    Wh1 = mm(h1, W1)
    Wh2 = mm(h2, W2)
    F_ = W1.shape[1]
    e = mm(Wh1, a[:F_, :]) + mm(Wh2, a[F_:, :]).T
    e = jnp.where(e > 0, e, alpha * e)
    att = jnp.where(adj > 0, e, jnp.float32(-9000000000000000.0))
    attention1 = jax.nn.softmax(att, axis=1)
    attention2 = jax.nn.softmax(att, axis=0)
    h_prime2 = mm(attention1.T, Wh1)
    h_prime1 = mm(attention2, Wh2)
    elu = lambda x: jnp.where(x > 0, x, jnp.exp(jnp.minimum(x, 0.0)) - 1.0)
    return elu(h_prime1), elu(h_prime2)


if __name__ == "__main__":
    # Small, TPU-friendly synthetic problem.
    N1, N2 = 8, 16
    IN1, IN2 = 16, 32
    F = 32
    ALPHA = 0.2

    key = jax.random.PRNGKey(0)
    k1, k2, k3, kw1, kw2, ka = jax.random.split(key, 6)

    h1 = jax.random.normal(k1, (N1, IN1), jnp.float32)
    h2 = jax.random.normal(k2, (N2, IN2), jnp.float32)
    adj = (jax.random.uniform(k3, (N1, N2), jnp.float32) > 0.3).astype(jnp.float32)

    W1 = _xavier_uniform(kw1, (IN1, F))
    W2 = _xavier_uniform(kw2, (IN2, F))
    a = _xavier_uniform(ka, (2 * F, 1))

    ref1, ref2 = _reference_forward(h1, h2, adj, W1, W2, a, ALPHA)

    # f32 MXU-operand path.
    w_f32 = prepare_bgat_weights(W1, W2, a, mxu_dtype=jnp.float32)
    hp1, hp2 = bgraph_attention_forward(h1, h2, adj, w_f32, alpha=ALPHA, concat=True)
    hp1 = jax.block_until_ready(hp1)
    hp2 = jax.block_until_ready(hp2)
    assert hp1.shape == (N1, F) and hp2.shape == (N2, F)
    assert jnp.allclose(hp1, ref1, atol=5e-2, rtol=5e-2)
    assert jnp.allclose(hp2, ref2, atol=5e-2, rtol=5e-2)

    # bf16 MXU-operand path (default / performance path on v5e, v6e, v7x):
    # f32 accumulation + f32 elementwise, looser tolerance from bf16 operands.
    w_bf16 = prepare_bgat_weights(W1, W2, a, mxu_dtype=jnp.bfloat16)
    bp1, bp2 = bgraph_attention_forward(h1, h2, adj, w_bf16, alpha=ALPHA, concat=True)
    bp1 = jax.block_until_ready(bp1)
    bp2 = jax.block_until_ready(bp2)
    assert bp1.shape == (N1, F) and bp2.shape == (N2, F)
    assert jnp.allclose(bp1, ref1, atol=0.2, rtol=0.2)
    assert jnp.allclose(bp2, ref2, atol=0.2, rtol=0.2)

    print("KERNEL_OK")
</pallas_src>

<mosaic_0001>
module attributes {stable_mosaic.version = 11 : i64} {
  func.func @_bgat_kernel(%arg0: memref<8x128xf32, #tpu.memory_space<vmem>>, %arg1: memref<16x128xf32, #tpu.memory_space<vmem>>, %arg2: memref<8x16xi8, #tpu.memory_space<vmem>>, %arg3: memref<128x128xf32, #tpu.memory_space<vmem>>, %arg4: memref<128x128xf32, #tpu.memory_space<vmem>>, %arg5: memref<8x128xf32, #tpu.memory_space<vmem>>, %arg6: memref<16x128xf32, #tpu.memory_space<vmem>>) attributes {dimension_semantics = [], scalar_prefetch = 0 : i64, scratch_operands = 0 : i64, tpu.core_type = #tpu.core_type<tc>} {
    %c0 = arith.constant 0 : index
    %c0_0 = arith.constant 0 : index
    %0 = vector.load %arg0[%c0, %c0_0] : memref<8x128xf32, #tpu.memory_space<vmem>>, vector<8x128xf32>
    %c0_1 = arith.constant 0 : index
    %c0_2 = arith.constant 0 : index
    %1 = vector.load %arg3[%c0_1, %c0_2] : memref<128x128xf32, #tpu.memory_space<vmem>>, vector<128x128xf32>
    %cst = arith.constant dense<0.000000e+00> : vector<8x128xf32>
    %2 = tpu.matmul %0, %1, %cst {dimension_numbers = #tpu.dot_dimension_numbers<[1], [0], [0], [1], [0, 0, 1, 1], [], []>} : vector<8x128xf32>, vector<128x128xf32>, vector<8x128xf32> -> vector<8x128xf32>
    %c0_3 = arith.constant 0 : index
    %c0_4 = arith.constant 0 : index
    %3 = vector.load %arg1[%c0_3, %c0_4] : memref<16x128xf32, #tpu.memory_space<vmem>>, vector<16x128xf32>
    %c0_5 = arith.constant 0 : index
    %c0_6 = arith.constant 0 : index
    %4 = vector.load %arg4[%c0_5, %c0_6] : memref<128x128xf32, #tpu.memory_space<vmem>>, vector<128x128xf32>
    %cst_7 = arith.constant dense<0.000000e+00> : vector<16x128xf32>
    %5 = tpu.matmul %3, %4, %cst_7 {dimension_numbers = #tpu.dot_dimension_numbers<[1], [0], [0], [1], [0, 0, 1, 1], [], []>} : vector<16x128xf32>, vector<128x128xf32>, vector<16x128xf32> -> vector<16x128xf32>
    %6 = vector.extract_strided_slice %2 {offsets = [0, 32], sizes = [8, 1], strides = [1, 1]} : vector<8x128xf32> to vector<8x1xf32>
    %7 = vector.extract_strided_slice %5 {offsets = [0, 32], sizes = [16, 1], strides = [1, 1]} : vector<16x128xf32> to vector<16x1xf32>
    %8 = tpu.transpose %7, [1, 0] : vector<16x1xf32> -> vector<1x16xf32>
    %9 = vector.broadcast %6 : vector<8x1xf32> to vector<8x16xf32>
    %10 = vector.broadcast %8 : vector<1x16xf32> to vector<8x16xf32>
    %11 = arith.addf %9, %10 : vector<8x16xf32>
    %cst_8 = arith.constant 0.000000e+00 : f32
    %12 = vector.broadcast %cst_8 : f32 to vector<8x16xf32>
    %13 = arith.cmpf ogt, %11, %12 : vector<8x16xf32>
    %cst_9 = arith.constant 2.000000e-01 : f32
    %14 = vector.broadcast %cst_9 : f32 to vector<8x16xf32>
    %15 = arith.mulf %14, %11 : vector<8x16xf32>
    %16 = arith.select %13, %11, %15 : vector<8x16xi1>, vector<8x16xf32>
    %c0_10 = arith.constant 0 : index
    %c0_11 = arith.constant 0 : index
    %17 = vector.load %arg2[%c0_10, %c0_11] : memref<8x16xi8, #tpu.memory_space<vmem>>, vector<8x16xi8>
    %18 = arith.sitofp %17 : vector<8x16xi8> to vector<8x16xf32>
    %cst_12 = arith.constant 0.000000e+00 : f32
    %19 = vector.broadcast %cst_12 : f32 to vector<8x16xf32>
    %20 = arith.cmpf ogt, %18, %19 : vector<8x16xf32>
    %cst_13 = arith.constant -9.000000e+15 : f32
    %21 = vector.broadcast %cst_13 : f32 to vector<8x16xf32>
    %22 = arith.select %20, %16, %21 : vector<8x16xi1>, vector<8x16xf32>
    %cst_14 = arith.constant dense<0xFF800000> : vector<8xf32>
    %23 = vector.multi_reduction <maximumf>, %22, %cst_14 [1] : vector<8x16xf32> to vector<8xf32>
    %24 = vector.shape_cast %23 : vector<8xf32> to vector<8x1xf32>
    %25 = vector.broadcast %24 : vector<8x1xf32> to vector<8x16xf32>
    %26 = arith.subf %22, %25 : vector<8x16xf32>
    %27 = math.exp %26 : vector<8x16xf32>
    %cst_15 = arith.constant dense<0.000000e+00> : vector<8xf32>
    %28 = vector.multi_reduction <add>, %27, %cst_15 [1] : vector<8x16xf32> to vector<8xf32>
    %29 = vector.shape_cast %28 : vector<8xf32> to vector<8x1xf32>
    %cst_16 = arith.constant 1.000000e+00 : f32
    %30 = vector.broadcast %cst_16 : f32 to vector<8x1xf32>
    %31 = arith.divf %30, %29 : vector<8x1xf32>
    %32 = vector.broadcast %31 : vector<8x1xf32> to vector<8x128xf32>
    %33 = arith.mulf %2, %32 : vector<8x128xf32>
    %cst_17 = arith.constant dense<0.000000e+00> : vector<16x128xf32>
    %34 = tpu.matmul %27, %33, %cst_17 {dimension_numbers = #tpu.dot_dimension_numbers<[0], [0], [1], [1], [0, 1, 1, 1], [], []>} : vector<8x16xf32>, vector<8x128xf32>, vector<16x128xf32> -> vector<16x128xf32>
    %cst_18 = arith.constant dense<0xFF800000> : vector<16xf32>
    %35 = vector.multi_reduction <maximumf>, %22, %cst_18 [0] : vector<8x16xf32> to vector<16xf32>
    %36 = vector.shape_cast %35 : vector<16xf32> to vector<1x16xf32>
    %37 = vector.broadcast %36 : vector<1x16xf32> to vector<8x16xf32>
    %38 = arith.subf %22, %37 : vector<8x16xf32>
    %39 = math.exp %38 : vector<8x16xf32>
    %cst_19 = arith.constant dense<0.000000e+00> : vector<16xf32>
    %40 = vector.multi_reduction <add>, %39, %cst_19 [0] : vector<8x16xf32> to vector<16xf32>
    %41 = vector.shape_cast %40 : vector<16xf32> to vector<1x16xf32>
    %cst_20 = arith.constant 1.000000e+00 : f32
    %42 = vector.broadcast %cst_20 : f32 to vector<1x16xf32>
    %43 = arith.divf %42, %41 : vector<1x16xf32>
    %44 = tpu.transpose %43, [1, 0] : vector<1x16xf32> -> vector<16x1xf32>
    %45 = vector.broadcast %44 : vector<16x1xf32> to vector<16x128xf32>
    %46 = arith.mulf %5, %45 : vector<16x128xf32>
    %cst_21 = arith.constant dense<0.000000e+00> : vector<8x128xf32>
    %47 = tpu.matmul %39, %46, %cst_21 {dimension_numbers = #tpu.dot_dimension_numbers<[1], [0], [0], [1], [0, 0, 1, 1], [], []>} : vector<8x16xf32>, vector<16x128xf32>, vector<8x128xf32> -> vector<8x128xf32>
    %cst_22 = arith.constant 0.000000e+00 : f32
    %48 = vector.broadcast %cst_22 : f32 to vector<8x128xf32>
    %49 = arith.cmpf ogt, %47, %48 : vector<8x128xf32>
    %cst_23 = arith.constant 0.000000e+00 : f32
    %50 = vector.broadcast %cst_23 : f32 to vector<8x128xf32>
    %51 = arith.minimumf %47, %50 : vector<8x128xf32>
    %52 = math.exp %51 : vector<8x128xf32>
    %cst_24 = arith.constant 1.000000e+00 : f32
    %53 = vector.broadcast %cst_24 : f32 to vector<8x128xf32>
    %54 = arith.subf %52, %53 : vector<8x128xf32>
    %55 = arith.select %49, %47, %54 : vector<8x128xi1>, vector<8x128xf32>
    %cst_25 = arith.constant 0.000000e+00 : f32
    %56 = vector.broadcast %cst_25 : f32 to vector<16x128xf32>
    %57 = arith.cmpf ogt, %34, %56 : vector<16x128xf32>
    %cst_26 = arith.constant 0.000000e+00 : f32
    %58 = vector.broadcast %cst_26 : f32 to vector<16x128xf32>
    %59 = arith.minimumf %34, %58 : vector<16x128xf32>
    %60 = math.exp %59 : vector<16x128xf32>
    %cst_27 = arith.constant 1.000000e+00 : f32
    %61 = vector.broadcast %cst_27 : f32 to vector<16x128xf32>
    %62 = arith.subf %60, %61 : vector<16x128xf32>
    %63 = arith.select %57, %34, %62 : vector<16x128xi1>, vector<16x128xf32>
    %c0_28 = arith.constant 0 : index
    %c0_29 = arith.constant 0 : index
    %64 = vector.load %arg5[%c0_28, %c0_29] : memref<8x128xf32, #tpu.memory_space<vmem>>, vector<8x128xf32>
    tpu.vector_store %arg5[%c0_28, %c0_29], %55 {strides = array<i32>} : memref<8x128xf32, #tpu.memory_space<vmem>>, vector<8x128xf32>,
    %c0_30 = arith.constant 0 : index
    %c0_31 = arith.constant 0 : index
    %65 = vector.load %arg6[%c0_30, %c0_31] : memref<16x128xf32, #tpu.memory_space<vmem>>, vector<16x128xf32>
    tpu.vector_store %arg6[%c0_30, %c0_31], %63 {strides = array<i32>} : memref<16x128xf32, #tpu.memory_space<vmem>>, vector<16x128xf32>,
    return
  }
}

</mosaic_0001>

<llo_original>
// kernel: tpu_custom_call.1
$region0: #{tpu_custom_call.1}
  #allocation0 [shape = 'u32[]', space=smem, size = 0x4, offset = 0x4, fixed_abs, tag = 'smem constant byte address 0x4 - core index']
  #allocation1 [shape = 'u32[144,128]{1,0:T(1,128)}', space=vmem, size = 0x12000, scoped, tag = 'internal scratch']
  %s0 = inlined_call_operand.hbm [shape: f32[8,128], index: 0, kind: input, shape index: {}]
  %s1 = inlined_call_operand.hbm [shape: f32[16,128], index: 1, kind: input, shape index: {}]
  %s2 = inlined_call_operand.vmem [shape: s8[8,16], index: 2, kind: input, shape index: {}]
  %s3 = inlined_call_operand.hbm [shape: f32[128,128], index: 3, kind: input, shape index: {}]
  %s4 = inlined_call_operand.hbm [shape: f32[128,128], index: 4, kind: input, shape index: {}]
  %s5 = inlined_call_operand.hbm [shape: f32[8,128], index: 5, kind: output, shape index: {0}]
  %s6 = inlined_call_operand.hbm [shape: f32[16,128], index: 6, kind: output, shape index: {1}]
  %7 = xla_tuple %s5, %s6
  %s8 = sld [smem:[#allocation0]]
  $region54: #{tpu_custom_call.1} parent=0
    _
  %s10 = ssub.s32 1, %s8
  %s11 = scalar_select 0, %s10, %s8
  $region1: #{tpu_custom_call.1} parent=0
    #allocation2 [shape = 'u8[4096]{0}', space=vmem, size = 0x1000, scoped, tag = 'input window, operand 0, single buffered']
    #allocation3 [shape = 's32[1]{0}', space=sflag, size = 0x4, scoped, tag = 'scoped memory for tpu_custom_call.1']
    #allocation4 [shape = 's32[1]{0}', space=sflag, size = 0x4, scoped, tag = 'scoped memory for tpu_custom_call.1']
    #allocation5 [shape = 'u8[8192]{0}', space=vmem, size = 0x2000, scoped, tag = 'input window, operand 1, single buffered']
    #allocation6 [shape = 's32[1]{0}', space=sflag, size = 0x4, scoped, tag = 'scoped memory for tpu_custom_call.1']
    #allocation7 [shape = 'u8[65536]{0}', space=vmem, size = 0x10000, scoped, tag = 'input window, operand 3, single buffered']
    #allocation8 [shape = 'u8[65536]{0}', space=vmem, size = 0x10000, scoped, tag = 'input window, operand 4, single buffered']
    #allocation9 [shape = 's32[1]{0}', space=sflag, size = 0x4, scoped, tag = 'scoped memory for tpu_custom_call.1']
    #allocation10 [shape = 'u8[4096]{0}', space=vmem, size = 0x1000, scoped, tag = 'output window, operand 0, single buffered']
    #allocation11 [shape = 'u8[8192]{0}', space=vmem, size = 0x2000, scoped, tag = 'output window, operand 1, single buffered']
    #allocation12 [shape = 's32[1]{0}', space=sflag, size = 0x4, scoped, tag = 'scoped memory for tpu_custom_call.1']
    %12 = vsyncpa [#allocation3], 0
    %13 = vsyncpa [#allocation6], 0
    %14 = vsyncpa [#allocation9], 0
    %15 = vsyncpa [#allocation4], 0
    %16 = vsyncpa [#allocation12], 0
    // Predicated region
    $region2: #{tpu_custom_call.1} parent=1 // pred_check
      _
    $region3: #{tpu_custom_call.1} parent=1 // pred_check_branch
      %18 = sbr.rel (0) target = $region5
    $region4: #{tpu_custom_call.1} parent=1 // pred_region
      %s20 = ssub.s32 128, 128
      %21 = vsyncadd [#allocation3], %s20
      %s23 = sshll.u32 [#allocation2], 4
      %s24 = int_to_ptr.vmem [resolvable:$true] %s23
      %26 = dma.hbm_to_vmem [thread:$0]  %s0, 128, %s24, [#allocation3]
    $region5: #{tpu_custom_call.1} parent=1 // pred_fallthru
      _
    // Predicated region
    $region6: #{tpu_custom_call.1} parent=1 // pred_check
      _
    $region7: #{tpu_custom_call.1} parent=1 // pred_check_branch
      %28 = sbr.rel (0) target = $region9
    $region8: #{tpu_custom_call.1} parent=1 // pred_region
      %s30 = ssub.s32 256, 256
      %31 = vsyncadd [#allocation6], %s30
      %s32 = sshll.u32 [#allocation5], 4
      %s33 = int_to_ptr.vmem [resolvable:$true] %s32
      %38 = dma.hbm_to_vmem [thread:$0]  %s1, 256, %s33, [#allocation6], 128, 128, 8
    $region9: #{tpu_custom_call.1} parent=1 // pred_fallthru
      _
    // Predicated region
    $region10: #{tpu_custom_call.1} parent=1 // pred_check
      _
    $region11: #{tpu_custom_call.1} parent=1 // pred_check_branch
      %40 = sbr.rel (0) target = $region13
    $region12: #{tpu_custom_call.1} parent=1 // pred_region
      _
    $region13: #{tpu_custom_call.1} parent=1 // pred_fallthru
      _
    // Predicated region
    $region14: #{tpu_custom_call.1} parent=1 // pred_check
      _
    $region15: #{tpu_custom_call.1} parent=1 // pred_check_branch
      %42 = sbr.rel (0) target = $region17
    $region16: #{tpu_custom_call.1} parent=1 // pred_region
      %s44 = ssub.s32 2048, 2048
      %45 = vsyncadd [#allocation6], %s44
      %s46 = sshll.u32 [#allocation7], 4
      %s47 = int_to_ptr.vmem [resolvable:$true] %s46
      %52 = dma.hbm_to_vmem [thread:$0]  %s3, 2048, %s47, [#allocation6], 128, 128, 8
    $region17: #{tpu_custom_call.1} parent=1 // pred_fallthru
      _
    // Predicated region
    $region18: #{tpu_custom_call.1} parent=1 // pred_check
      _
    $region19: #{tpu_custom_call.1} parent=1 // pred_check_branch
      %54 = sbr.rel (0) target = $region21
    $region20: #{tpu_custom_call.1} parent=1 // pred_region
      %s56 = ssub.s32 2048, 2048
      %57 = vsyncadd [#allocation9], %s56
      %s58 = sshll.u32 [#allocation8], 4
      %s59 = int_to_ptr.vmem [resolvable:$true] %s58
      %64 = dma.hbm_to_vmem [thread:$0]  %s4, 2048, %s59, [#allocation9], 128, 128, 8
    $region21: #{tpu_custom_call.1} parent=1 // pred_fallthru
      _
    // Predicated region
    $region22: #{tpu_custom_call.1} parent=1 // pred_check
      _
    $region23: #{tpu_custom_call.1} parent=1 // pred_check_branch
      %66 = sbr.rel (0) target = $region25
    $region24: #{tpu_custom_call.1} parent=1 // pred_region
      %67 = dma.done [#allocation3], 128
    $region25: #{tpu_custom_call.1} parent=1 // pred_fallthru
      _
    // Predicated region
    $region26: #{tpu_custom_call.1} parent=1 // pred_check
      _
    $region27: #{tpu_custom_call.1} parent=1 // pred_check_branch
      %69 = sbr.rel (0) target = $region29
    $region28: #{tpu_custom_call.1} parent=1 // pred_region
      %70 = dma.done [#allocation6], 256
    $region29: #{tpu_custom_call.1} parent=1 // pred_fallthru
      _
    // Predicated region
    $region30: #{tpu_custom_call.1} parent=1 // pred_check
      _
    $region31: #{tpu_custom_call.1} parent=1 // pred_check_branch
      %72 = sbr.rel (0) target = $region33
    $region32: #{tpu_custom_call.1} parent=1 // pred_region
      %73 = dma.done [#allocation6], 2048
    $region33: #{tpu_custom_call.1} parent=1 // pred_fallthru
      _
    // Predicated region
    $region34: #{tpu_custom_call.1} parent=1 // pred_check
      _
    $region35: #{tpu_custom_call.1} parent=1 // pred_check_branch
      %75 = sbr.rel (0) target = $region37
    $region36: #{tpu_custom_call.1} parent=1 // pred_region
      %76 = dma.done [#allocation9], 2048
    $region37: #{tpu_custom_call.1} parent=1 // pred_fallthru
      _
    %v77 = vld [vmem:[#allocation2] sm:$0xff]
    %v78 = vld [vmem:[#allocation7] sm:$0xff]
    %v79 = vld [vmem:[#allocation7 + $0x8] sm:$0xff]
    %v80 = vld [vmem:[#allocation7 + $0x10] sm:$0xff]
    %v81 = vld [vmem:[#allocation7 + $0x18] sm:$0xff]
    %v82 = vld [vmem:[#allocation7 + $0x20] sm:$0xff]
    %v83 = vld [vmem:[#allocation7 + $0x28] sm:$0xff]
    %v84 = vld [vmem:[#allocation7 + $0x30] sm:$0xff]
    %v85 = vld [vmem:[#allocation7 + $0x38] sm:$0xff]
    %v86 = vld [vmem:[#allocation7 + $0x40] sm:$0xff]
    %v87 = vld [vmem:[#allocation7 + $0x48] sm:$0xff]
    %v88 = vld [vmem:[#allocation7 + $0x50] sm:$0xff]
    %v89 = vld [vmem:[#allocation7 + $0x58] sm:$0xff]
    %v90 = vld [vmem:[#allocation7 + $0x60] sm:$0xff]
    %v91 = vld [vmem:[#allocation7 + $0x68] sm:$0xff]
    %v92 = vld [vmem:[#allocation7 + $0x70] sm:$0xff]
    %v93 = vld [vmem:[#allocation7 + $0x78] sm:$0xff]
    %94 = vmatprep.subr.mxu0 0.0
    %95 = vmatpush1.msra.mxu0 %v78
    %96 = vmatprep.subr.mxu0 0.0
    %97 = vmatpush1.msra.mxu0 %v79
    %98 = vmatprep.subr.mxu0 0.0
    %99 = vmatpush1.msra.mxu0 %v80
    %100 = vmatprep.subr.mxu0 0.0
    %101 = vmatpush1.msra.mxu0 %v81
    %102 = vmatprep.subr.mxu0 0.0
    %103 = vmatpush1.msra.mxu0 %v82
    %104 = vmatprep.subr.mxu0 0.0
    %105 = vmatpush1.msra.mxu0 %v83
    %106 = vmatprep.subr.mxu0 0.0
    %107 = vmatpush1.msra.mxu0 %v84
    %108 = vmatprep.subr.mxu0 0.0
    %109 = vmatpush1.msra.mxu0 %v85
    %110 = vmatprep.subr.mxu0 0.0
    %111 = vmatpush1.msra.mxu0 %v86
    %112 = vmatprep.subr.mxu0 0.0
    %113 = vmatpush1.msra.mxu0 %v87
    %114 = vmatprep.subr.mxu0 0.0
    %115 = vmatpush1.msra.mxu0 %v88
    %116 = vmatprep.subr.mxu0 0.0
    %117 = vmatpush1.msra.mxu0 %v89
    %118 = vmatprep.subr.mxu0 0.0
    %119 = vmatpush1.msra.mxu0 %v90
    %120 = vmatprep.subr.mxu0 0.0
    %121 = vmatpush1.msra.mxu0 %v91
    %122 = vmatprep.subr.mxu0 0.0
    %123 = vmatpush1.msra.mxu0 %v92
    %124 = vmatprep.subr.mxu0 0.0
    %125 = vmatpush1.msra.mxu0 %v93
    %126 = vmatprep.subr.mxu0 0.0
    %127 = vmatpush1.msra.mxu0 0.0
    %128 = vmatprep.subr.mxu0 0.0
    %129 = vmatpush1.msra.mxu0 0.0
    %130 = vmatprep.subr.mxu0 0.0
    %131 = vmatpush1.msra.mxu0 0.0
    %132 = vmatprep.subr.mxu0 0.0
    %133 = vmatpush1.msra.mxu0 0.0
    %134 = vmatprep.subr.mxu0 0.0
    %135 = vmatpush1.msra.mxu0 0.0
    %136 = vmatprep.subr.mxu0 0.0
    %137 = vmatpush1.msra.mxu0 0.0
    %138 = vmatprep.subr.mxu0 0.0
    %139 = vmatpush1.msra.mxu0 0.0
    %140 = vmatprep.subr.mxu0 0.0
    %141 = vmatpush1.msra.mxu0 0.0
    %142 = vmatprep.subr.mxu0 0.0
    %143 = vmatpush1.msra.mxu0 0.0
    %144 = vmatprep.subr.mxu0 0.0
    %145 = vmatpush1.msra.mxu0 0.0
    %146 = vmatprep.subr.mxu0 0.0
    %147 = vmatpush1.msra.mxu0 0.0
    %148 = vmatprep.subr.mxu0 0.0
    %149 = vmatpush1.msra.mxu0 0.0
    %150 = vmatprep.subr.mxu0 0.0
    %151 = vmatpush1.msra.mxu0 0.0
    %152 = vmatprep.subr.mxu0 0.0
    %153 = vmatpush1.msra.mxu0 0.0
    %154 = vmatprep.subr.mxu0 0.0
    %155 = vmatpush1.msra.mxu0 0.0
    %156 = vmatprep.subr.mxu0 0.0
    %157 = vmatpush1.msra.mxu0 0.0
    %158 = vmatprep.mubr.f32.mxu0 0.0
    %159 = vmatmul.mubr.f32.gmra.mrb[0].mxu0 %v77
    %v160 = vpop.f32.mrb[0].mxu0
    %v161 = vadd.f32 0.0, %v160
    %v162 = vpop.f32.mrb[0].mxu0
    %163 = vdwg.mxu0
    %v164 = vld [vmem:[#allocation5] sm:$0xff]
    %v165 = vld [vmem:[#allocation5 + $0x8] sm:$0xff]
    %v166 = vld [vmem:[#allocation8] sm:$0xff]
    %v167 = vld [vmem:[#allocation8 + $0x8] sm:$0xff]
    %v168 = vld [vmem:[#allocation8 + $0x10] sm:$0xff]
    %v169 = vld [vmem:[#allocation8 + $0x18] sm:$0xff]
    %v170 = vld [vmem:[#allocation8 + $0x20] sm:$0xff]
    %v171 = vld [vmem:[#allocation8 + $0x28] sm:$0xff]
    %v172 = vld [vmem:[#allocation8 + $0x30] sm:$0xff]
    %v173 = vld [vmem:[#allocation8 + $0x38] sm:$0xff]
    %v174 = vld [vmem:[#allocation8 + $0x40] sm:$0xff]
    %v175 = vld [vmem:[#allocation8 + $0x48] sm:$0xff]
    %v176 = vld [vmem:[#allocation8 + $0x50] sm:$0xff]
    %v177 = vld [vmem:[#allocation8 + $0x58] sm:$0xff]
    %v178 = vld [vmem:[#allocation8 + $0x60] sm:$0xff]
    %v179 = vld [vmem:[#allocation8 + $0x68] sm:$0xff]
    %v180 = vld [vmem:[#allocation8 + $0x70] sm:$0xff]
    %v181 = vld [vmem:[#allocation8 + $0x78] sm:$0xff]
    %182 = vmatprep.subr.mxu0 0.0
    %183 = vmatpush1.msra.mxu0 %v166
    %184 = vmatprep.subr.mxu0 0.0
    %185 = vmatpush1.msra.mxu0 %v167
    %186 = vmatprep.subr.mxu0 0.0
    %187 = vmatpush1.msra.mxu0 %v168
    %188 = vmatprep.subr.mxu0 0.0
    %189 = vmatpush1.msra.mxu0 %v169
    %190 = vmatprep.subr.mxu0 0.0
    %191 = vmatpush1.msra.mxu0 %v170
    %192 = vmatprep.subr.mxu0 0.0
    %193 = vmatpush1.msra.mxu0 %v171
    %194 = vmatprep.subr.mxu0 0.0
    %195 = vmatpush1.msra.mxu0 %v172
    %196 = vmatprep.subr.mxu0 0.0
    %197 = vmatpush1.msra.mxu0 %v173
    %198 = vmatprep.subr.mxu0 0.0
    %199 = vmatpush1.msra.mxu0 %v174
    %200 = vmatprep.subr.mxu0 0.0
    %201 = vmatpush1.msra.mxu0 %v175
    %202 = vmatprep.subr.mxu0 0.0
    %203 = vmatpush1.msra.mxu0 %v176
    %204 = vmatprep.subr.mxu0 0.0
    %205 = vmatpush1.msra.mxu0 %v177
    %206 = vmatprep.subr.mxu0 0.0
    %207 = vmatpush1.msra.mxu0 %v178
    %208 = vmatprep.subr.mxu0 0.0
    %209 = vmatpush1.msra.mxu0 %v179
    %210 = vmatprep.subr.mxu0 0.0
    %211 = vmatpush1.msra.mxu0 %v180
    %212 = vmatprep.subr.mxu0 0.0
    %213 = vmatpush1.msra.mxu0 %v181
    %214 = vmatprep.subr.mxu0 0.0
    %215 = vmatpush1.msra.mxu0 0.0
    %216 = vmatprep.subr.mxu0 0.0
    %217 = vmatpush1.msra.mxu0 0.0
    %218 = vmatprep.subr.mxu0 0.0
    %219 = vmatpush1.msra.mxu0 0.0
    %220 = vmatprep.subr.mxu0 0.0
    %221 = vmatpush1.msra.mxu0 0.0
    %222 = vmatprep.subr.mxu0 0.0
    %223 = vmatpush1.msra.mxu0 0.0
    %224 = vmatprep.subr.mxu0 0.0
    %225 = vmatpush1.msra.mxu0 0.0
    %226 = vmatprep.subr.mxu0 0.0
    %227 = vmatpush1.msra.mxu0 0.0
    %228 = vmatprep.subr.mxu0 0.0
    %229 = vmatpush1.msra.mxu0 0.0
    %230 = vmatprep.subr.mxu0 0.0
    %231 = vmatpush1.msra.mxu0 0.0
    %232 = vmatprep.subr.mxu0 0.0
    %233 = vmatpush1.msra.mxu0 0.0
    %234 = vmatprep.subr.mxu0 0.0
    %235 = vmatpush1.msra.mxu0 0.0
    %236 = vmatprep.subr.mxu0 0.0
    %237 = vmatpush1.msra.mxu0 0.0
    %238 = vmatprep.subr.mxu0 0.0
    %239 = vmatpush1.msra.mxu0 0.0
    %240 = vmatprep.subr.mxu0 0.0
    %241 = vmatpush1.msra.mxu0 0.0
    %242 = vmatprep.subr.mxu0 0.0
    %243 = vmatpush1.msra.mxu0 0.0
    %244 = vmatprep.subr.mxu0 0.0
    %245 = vmatpush1.msra.mxu0 0.0
    %246 = vmatprep.mubr.f32.mxu0 0.0
    %247 = vmatmul.mubr.f32.gmra.mrb[0].mxu0 %v164
    %v248 = vpop.f32.mrb[0].mxu0
    %v249 = vadd.f32 0.0, %v248
    %v250 = vpop.f32.mrb[0].mxu0
    %251 = vmatprep.mubr.f32.mxu0 0.0
    %252 = vmatmul.mubr.f32.gmra.mrb[0].mxu0 %v165
    %v253 = vpop.f32.mrb[0].mxu0
    %v254 = vadd.f32 0.0, %v253
    %v255 = vpop.f32.mrb[0].mxu0
    %256 = vdwg.mxu0
    %259 = vrot.lane.b32.xlu0 %v249, 96
    %v260 = vpop.permute.xlu0 %259
    %261 = vrot.lane.b32.xlu0 %v254, 96
    %v262 = vpop.permute.xlu0 %261
    %265 = vxpose.xlu0.b32.start [1/16] %v260, 128
    %266 = vxpose.xlu0.b32.cont [2/16] %v262, 128
    %267 = vxpose.xlu0.b32.cont [3/16] 0.0, 128
    %268 = vxpose.xlu0.b32.cont [4/16] 0.0, 128
    %269 = vxpose.xlu0.b32.cont [5/16] 0.0, 128
    %270 = vxpose.xlu0.b32.cont [6/16] 0.0, 128
    %271 = vxpose.xlu0.b32.cont [7/16] 0.0, 128
    %272 = vxpose.xlu0.b32.cont [8/16] 0.0, 128
    %273 = vxpose.xlu0.b32.cont [9/16] 0.0, 128
    %274 = vxpose.xlu0.b32.cont [10/16] 0.0, 128
    %275 = vxpose.xlu0.b32.cont [11/16] 0.0, 128
    %276 = vxpose.xlu0.b32.cont [12/16] 0.0, 128
    %277 = vxpose.xlu0.b32.cont [13/16] 0.0, 128
    %278 = vxpose.xlu0.b32.cont [14/16] 0.0, 128
    %279 = vxpose.xlu0.b32.cont [15/16] 0.0, 128
    %280 = vxpose.xlu0.b32.end [16/16] 0.0, 128
    %v281 = vpop.trf.xlu0
    %v282 = vpop.trf.xlu0
    %v283 = vpop.trf.xlu0
    %v284 = vpop.trf.xlu0
    %v285 = vpop.trf.xlu0
    %v286 = vpop.trf.xlu0
    %v287 = vpop.trf.xlu0
    %v288 = vpop.trf.xlu0
    %v289 = vpop.trf.xlu0
    %v290 = vpop.trf.xlu0
    %v291 = vpop.trf.xlu0
    %v292 = vpop.trf.xlu0
    %v293 = vpop.trf.xlu0
    %v294 = vpop.trf.xlu0
    %v295 = vpop.trf.xlu0
    %v296 = vpop.trf.xlu0
    %298 = vset.pattern.permute.xlu0 32
    %299 = vperm.xlu0 %298, %v161
    %v300 = vpop.permute.xlu0 %299
    %v302 = vlaneseq
    %v303 = vshrl.u32 %v302, 7
    %v304 = vsub.s32 0, %v303
    %v305 = vrot.slane %v281, %v304
    %v306 = vadd.f32 %v300, %v305
    %vm307 = vcmp.gt.f32.partialorder %v306, 0.0
    %v308 = vmul.f32 %v306, 0.2
    %v309 = vsel %vm307, %v306, %v308
    %v310 = vld [vmem:[%s2] sm:$0x3]
    %v311 = vunpack.c.0.s8 %v310
    %v312 = vcvt.s32.f32 %v311
    %vm313 = vcmp.gt.f32.partialorder %v312, 0.0
    %v314 = vsel %vm313, %v309, -9e+15
    %vm315 = vcmask 130048
    %v316 = vsel %vm315, %v314, -inf
    %317 = vmax.xlane.f32.xlu0 %v316
    %v318 = vpop.xlane.xlu0 %317
    %v319 = vsub.f32 %v314, %v318
    %v320 = vmul.f32 %v319, 1.442695
    %v321 = vpow.pop %v320
    %v322 = vsel %vm315, %v321, 0.0
    %323 = vadd.xlane.f32.xlu0 %v322
    %v324 = vpop.xlane.xlu0 %323
    %v325 = vrcp.pop %v324
    %v326 = vmul.f32 1.0, %v325
    %v327 = vmul.f32 %v161, %v326
    %328 = vxpose.xlu0.b32.start [1/16] %v321, 128
    %329 = vxpose.xlu0.b32.cont [2/16] 0.0, 128
    %330 = vxpose.xlu0.b32.cont [3/16] 0.0, 128
    %331 = vxpose.xlu0.b32.cont [4/16] 0.0, 128
    %332 = vxpose.xlu0.b32.cont [5/16] 0.0, 128
    %333 = vxpose.xlu0.b32.cont [6/16] 0.0, 128
    %334 = vxpose.xlu0.b32.cont [7/16] 0.0, 128
    %335 = vxpose.xlu0.b32.cont [8/16] 0.0, 128
    %336 = vxpose.xlu0.b32.cont [9/16] 0.0, 128
    %337 = vxpose.xlu0.b32.cont [10/16] 0.0, 128
    %338 = vxpose.xlu0.b32.cont [11/16] 0.0, 128
    %339 = vxpose.xlu0.b32.cont [12/16] 0.0, 128
    %340 = vxpose.xlu0.b32.cont [13/16] 0.0, 128
    %341 = vxpose.xlu0.b32.cont [14/16] 0.0, 128
    %342 = vxpose.xlu0.b32.cont [15/16] 0.0, 128
    %343 = vxpose.xlu0.b32.end [16/16] 0.0, 128
    %v344 = vpop.trf.xlu0
    %v345 = vpop.trf.xlu0
    %v346 = vpop.trf.xlu0
    %v347 = vpop.trf.xlu0
    %v348 = vpop.trf.xlu0
    %v349 = vpop.trf.xlu0
    %v350 = vpop.trf.xlu0
    %v351 = vpop.trf.xlu0
    %v352 = vpop.trf.xlu0
    %v353 = vpop.trf.xlu0
    %v354 = vpop.trf.xlu0
    %v355 = vpop.trf.xlu0
    %v356 = vpop.trf.xlu0
    %v357 = vpop.trf.xlu0
    %v358 = vpop.trf.xlu0
    %v359 = vpop.trf.xlu0
    %vm360 = vcmask 64512
    %v362 = vsel %vm360, %v344, 0
    %v365 = vsel %vm360, %v345, 0
    %367 = vmatprep.subr.mxu0 0.0
    %368 = vmatpush1.msra.mxu0 %v327
    %369 = vmatprep.subr.mxu0 0.0
    %370 = vmatpush1.msra.mxu0 0.0
    %371 = vmatprep.subr.mxu0 0.0
    %372 = vmatpush1.msra.mxu0 0.0
    %373 = vmatprep.subr.mxu0 0.0
    %374 = vmatpush1.msra.mxu0 0.0
    %375 = vmatprep.subr.mxu0 0.0
    %376 = vmatpush1.msra.mxu0 0.0
    %377 = vmatprep.subr.mxu0 0.0
    %378 = vmatpush1.msra.mxu0 0.0
    %379 = vmatprep.subr.mxu0 0.0
    %380 = vmatpush1.msra.mxu0 0.0
    %381 = vmatprep.subr.mxu0 0.0
    %382 = vmatpush1.msra.mxu0 0.0
    %383 = vmatprep.subr.mxu0 0.0
    %384 = vmatpush1.msra.mxu0 0.0
    %385 = vmatprep.subr.mxu0 0.0
    %386 = vmatpush1.msra.mxu0 0.0
    %387 = vmatprep.subr.mxu0 0.0
    %388 = vmatpush1.msra.mxu0 0.0
    %389 = vmatprep.subr.mxu0 0.0
    %390 = vmatpush1.msra.mxu0 0.0
    %391 = vmatprep.subr.mxu0 0.0
    %392 = vmatpush1.msra.mxu0 0.0
    %393 = vmatprep.subr.mxu0 0.0
    %394 = vmatpush1.msra.mxu0 0.0
    %395 = vmatprep.subr.mxu0 0.0
    %396 = vmatpush1.msra.mxu0 0.0
    %397 = vmatprep.subr.mxu0 0.0
    %398 = vmatpush1.msra.mxu0 0.0
    %399 = vmatprep.subr.mxu0 0.0
    %400 = vmatpush1.msra.mxu0 0.0
    %401 = vmatprep.subr.mxu0 0.0
    %402 = vmatpush1.msra.mxu0 0.0
    %403 = vmatprep.subr.mxu0 0.0
    %404 = vmatpush1.msra.mxu0 0.0
    %405 = vmatprep.subr.mxu0 0.0
    %406 = vmatpush1.msra.mxu0 0.0
    %407 = vmatprep.subr.mxu0 0.0
    %408 = vmatpush1.msra.mxu0 0.0
    %409 = vmatprep.subr.mxu0 0.0
    %410 = vmatpush1.msra.mxu0 0.0
    %411 = vmatprep.subr.mxu0 0.0
    %412 = vmatpush1.msra.mxu0 0.0
    %413 = vmatprep.subr.mxu0 0.0
    %414 = vmatpush1.msra.mxu0 0.0
    %415 = vmatprep.subr.mxu0 0.0
    %416 = vmatpush1.msra.mxu0 0.0
    %417 = vmatprep.subr.mxu0 0.0
    %418 = vmatpush1.msra.mxu0 0.0
    %419 = vmatprep.subr.mxu0 0.0
    %420 = vmatpush1.msra.mxu0 0.0
    %421 = vmatprep.subr.mxu0 0.0
    %422 = vmatpush1.msra.mxu0 0.0
    %423 = vmatprep.subr.mxu0 0.0
    %424 = vmatpush1.msra.mxu0 0.0
    %425 = vmatprep.subr.mxu0 0.0
    %426 = vmatpush1.msra.mxu0 0.0
    %427 = vmatprep.subr.mxu0 0.0
    %428 = vmatpush1.msra.mxu0 0.0
    %429 = vmatprep.subr.mxu0 0.0
    %430 = vmatpush1.msra.mxu0 0.0
    %431 = vmatprep.mubr.f32.mxu0 0.0
    %432 = vmatmul.mubr.f32.gmra.mrb[0].mxu0 %v362
    %v433 = vpop.f32.mrb[0].mxu0
    %v434 = vadd.f32 0.0, %v433
    %v435 = vpop.f32.mrb[0].mxu0
    %436 = vmatprep.mubr.f32.mxu0 0.0
    %437 = vmatmul.mubr.f32.gmra.mrb[0].mxu0 %v365
    %v438 = vpop.f32.mrb[0].mxu0
    %v439 = vadd.f32 0.0, %v438
    %v440 = vpop.f32.mrb[0].mxu0
    %441 = vdwg.mxu0
    %v442 = vrot.slane %v316, 4
    %v443 = vmax.f32 %v316, %v442
    %v444 = vrot.slane %v443, 2
    %v445 = vmax.f32 %v443, %v444
    %v446 = vrot.slane %v445, 1
    %v447 = vmax.f32 %v445, %v446
    %v448 = vsub.f32 %v314, %v447
    %v449 = vmul.f32 %v448, 1.442695
    %v450 = vpow.pop %v449
    %v451 = vsel %vm315, %v450, 0.0
    %v452 = vrot.slane %v451, 4
    %v453 = vadd.f32 %v451, %v452
    %v454 = vrot.slane %v453, 2
    %v455 = vadd.f32 %v453, %v454
    %v456 = vrot.slane %v455, 1
    %v457 = vadd.f32 %v455, %v456
    %v458 = vrcp.pop %v457
    %v459 = vmul.f32 1.0, %v458
    %460 = vxpose.xlu0.b32.start [1/16] %v459, 128
    %461 = vxpose.xlu0.b32.cont [2/16] 0.0, 128
    %462 = vxpose.xlu0.b32.cont [3/16] 0.0, 128
    %463 = vxpose.xlu0.b32.cont [4/16] 0.0, 128
    %464 = vxpose.xlu0.b32.cont [5/16] 0.0, 128
    %465 = vxpose.xlu0.b32.cont [6/16] 0.0, 128
    %466 = vxpose.xlu0.b32.cont [7/16] 0.0, 128
    %467 = vxpose.xlu0.b32.cont [8/16] 0.0, 128
    %468 = vxpose.xlu0.b32.cont [9/16] 0.0, 128
    %469 = vxpose.xlu0.b32.cont [10/16] 0.0, 128
    %470 = vxpose.xlu0.b32.cont [11/16] 0.0, 128
    %471 = vxpose.xlu0.b32.cont [12/16] 0.0, 128
    %472 = vxpose.xlu0.b32.cont [13/16] 0.0, 128
    %473 = vxpose.xlu0.b32.cont [14/16] 0.0, 128
    %474 = vxpose.xlu0.b32.cont [15/16] 0.0, 128
    %475 = vxpose.xlu0.b32.end [16/16] 0.0, 128
    %v476 = vpop.trf.xlu0
    %v477 = vpop.trf.xlu0
    %v478 = vpop.trf.xlu0
    %v479 = vpop.trf.xlu0
    %v480 = vpop.trf.xlu0
    %v481 = vpop.trf.xlu0
    %v482 = vpop.trf.xlu0
    %v483 = vpop.trf.xlu0
    %v484 = vpop.trf.xlu0
    %v485 = vpop.trf.xlu0
    %v486 = vpop.trf.xlu0
    %v487 = vpop.trf.xlu0
    %v488 = vpop.trf.xlu0
    %v489 = vpop.trf.xlu0
    %v490 = vpop.trf.xlu0
    %v491 = vpop.trf.xlu0
    %493 = vset.pattern.permute.xlu0 0
    %494 = vperm.xlu0 %493, %v476
    %v495 = vpop.permute.xlu0 %494
    %498 = vset.pattern.permute.xlu0 0
    %499 = vperm.xlu0 %498, %v477
    %v500 = vpop.permute.xlu0 %499
    %v502 = vmul.f32 %v249, %v495
    %v503 = vmul.f32 %v254, %v500
    %v505 = vsel %vm315, %v450, 0
    %507 = vmatprep.subr.mxu0 0.0
    %508 = vmatpush1.msra.mxu0 %v502
    %509 = vmatprep.subr.mxu0 0.0
    %510 = vmatpush1.msra.mxu0 %v503
    %511 = vmatprep.subr.mxu0 0.0
    %512 = vmatpush1.msra.mxu0 0.0
    %513 = vmatprep.subr.mxu0 0.0
    %514 = vmatpush1.msra.mxu0 0.0
    %515 = vmatprep.subr.mxu0 0.0
    %516 = vmatpush1.msra.mxu0 0.0
    %517 = vmatprep.subr.mxu0 0.0
    %518 = vmatpush1.msra.mxu0 0.0
    %519 = vmatprep.subr.mxu0 0.0
    %520 = vmatpush1.msra.mxu0 0.0
    %521 = vmatprep.subr.mxu0 0.0
    %522 = vmatpush1.msra.mxu0 0.0
    %523 = vmatprep.subr.mxu0 0.0
    %524 = vmatpush1.msra.mxu0 0.0
    %525 = vmatprep.subr.mxu0 0.0
    %526 = vmatpush1.msra.mxu0 0.0
    %527 = vmatprep.subr.mxu0 0.0
    %528 = vmatpush1.msra.mxu0 0.0
    %529 = vmatprep.subr.mxu0 0.0
    %530 = vmatpush1.msra.mxu0 0.0
    %531 = vmatprep.subr.mxu0 0.0
    %532 = vmatpush1.msra.mxu0 0.0
    %533 = vmatprep.subr.mxu0 0.0
    %534 = vmatpush1.msra.mxu0 0.0
    %535 = vmatprep.subr.mxu0 0.0
    %536 = vmatpush1.msra.mxu0 0.0
    %537 = vmatprep.subr.mxu0 0.0
    %538 = vmatpush1.msra.mxu0 0.0
    %539 = vmatprep.subr.mxu0 0.0
    %540 = vmatpush1.msra.mxu0 0.0
    %541 = vmatprep.subr.mxu0 0.0
    %542 = vmatpush1.msra.mxu0 0.0
    %543 = vmatprep.subr.mxu0 0.0
    %544 = vmatpush1.msra.mxu0 0.0
    %545 = vmatprep.subr.mxu0 0.0
    %546 = vmatpush1.msra.mxu0 0.0
    %547 = vmatprep.subr.mxu0 0.0
    %548 = vmatpush1.msra.mxu0 0.0
    %549 = vmatprep.subr.mxu0 0.0
    %550 = vmatpush1.msra.mxu0 0.0
    %551 = vmatprep.subr.mxu0 0.0
    %552 = vmatpush1.msra.mxu0 0.0
    %553 = vmatprep.subr.mxu0 0.0
    %554 = vmatpush1.msra.mxu0 0.0
    %555 = vmatprep.subr.mxu0 0.0
    %556 = vmatpush1.msra.mxu0 0.0
    %557 = vmatprep.subr.mxu0 0.0
    %558 = vmatpush1.msra.mxu0 0.0
    %559 = vmatprep.subr.mxu0 0.0
    %560 = vmatpush1.msra.mxu0 0.0
    %561 = vmatprep.subr.mxu0 0.0
    %562 = vmatpush1.msra.mxu0 0.0
    %563 = vmatprep.subr.mxu0 0.0
    %564 = vmatpush1.msra.mxu0 0.0
    %565 = vmatprep.subr.mxu0 0.0
    %566 = vmatpush1.msra.mxu0 0.0
    %567 = vmatprep.subr.mxu0 0.0
    %568 = vmatpush1.msra.mxu0 0.0
    %569 = vmatprep.subr.mxu0 0.0
    %570 = vmatpush1.msra.mxu0 0.0
    %571 = vmatprep.mubr.f32.mxu0 0.0
    %572 = vmatmul.mubr.f32.gmra.mrb[0].mxu0 %v505
    %v573 = vpop.f32.mrb[0].mxu0
    %v574 = vadd.f32 0.0, %v573
    %v575 = vpop.f32.mrb[0].mxu0
    %576 = vdwg.mxu0
    %vm577 = vcmp.gt.f32.partialorder %v574, 0.0
    %v578 = vmin.f32 %v574, 0.0
    %v579 = vmul.f32 %v578, 1.442695
    %v580 = vpow.pop %v579
    %v581 = vsub.f32 %v580, 1.0
    %v582 = vsel %vm577, %v574, %v581
    %vm583 = vcmp.gt.f32.partialorder %v434, 0.0
    %vm584 = vcmp.gt.f32.partialorder %v439, 0.0
    %v585 = vmin.f32 %v434, 0.0
    %v586 = vmin.f32 %v439, 0.0
    %v587 = vmul.f32 %v585, 1.442695
    %v588 = vpow.pop %v587
    %v589 = vmul.f32 %v586, 1.442695
    %v590 = vpow.pop %v589
    %v591 = vsub.f32 %v588, 1.0
    %v592 = vsub.f32 %v590, 1.0
    %v593 = vsel %vm583, %v434, %v591
    %v594 = vsel %vm584, %v439, %v592
    %595 = vst [vmem:[#allocation10] sm:$0xff] %v582
    %596 = vst [vmem:[#allocation11] sm:$0xff] %v593
    %597 = vst [vmem:[#allocation11 + $0x8] sm:$0xff] %v594
    // Predicated region
    $region38: #{tpu_custom_call.1} parent=1 // pred_check
      _
    $region39: #{tpu_custom_call.1} parent=1 // pred_check_branch
      %599 = sbr.rel (0) target = $region41
    $region40: #{tpu_custom_call.1} parent=1 // pred_region
      %s601 = ssub.s32 128, 128
      %602 = vsyncadd [#allocation4], %s601
      %s604 = sshll.u32 [#allocation10], 4
      %s605 = int_to_ptr.vmem [resolvable:$true] %s604
      %607 = dma.vmem_to_hbm [thread:$0]  %s605, 128, %s5, [#allocation4]
    $region41: #{tpu_custom_call.1} parent=1 // pred_fallthru
      _
    // Predicated region
    $region42: #{tpu_custom_call.1} parent=1 // pred_check
      _
    $region43: #{tpu_custom_call.1} parent=1 // pred_check_branch
      %609 = sbr.rel (0) target = $region45
    $region44: #{tpu_custom_call.1} parent=1 // pred_region
      %s611 = ssub.s32 256, 256
      %612 = vsyncadd [#allocation12], %s611
      %s613 = sshll.u32 [#allocation11], 4
      %s614 = int_to_ptr.vmem [resolvable:$true] %s613
      %619 = dma.vmem_to_hbm [thread:$0]  %s614, 256, %s6, [#allocation12], 128, 128, 8
    $region45: #{tpu_custom_call.1} parent=1 // pred_fallthru
      _
    // Predicated region
    $region46: #{tpu_custom_call.1} parent=1 // pred_check
      _
    $region47: #{tpu_custom_call.1} parent=1 // pred_check_branch
      %621 = sbr.rel (0) target = $region49
    $region48: #{tpu_custom_call.1} parent=1 // pred_region
      %622 = dma.done [#allocation4], 128
    $region49: #{tpu_custom_call.1} parent=1 // pred_fallthru
      _
    // Predicated region
    $region50: #{tpu_custom_call.1} parent=1 // pred_check
      _
    $region51: #{tpu_custom_call.1} parent=1 // pred_check_branch
      %624 = sbr.rel (0) target = $region53
    $region52: #{tpu_custom_call.1} parent=1 // pred_region
      %625 = dma.done [#allocation12], 256
    $region53: #{tpu_custom_call.1} parent=1 // pred_fallthru
      _
    %626 = vsyncpa [#allocation3], 1
    %627 = vsyncpa [#allocation6], 1
    %628 = vsyncpa [#allocation9], 1
    %629 = vsyncpa [#allocation4], 1
    %630 = vsyncpa [#allocation12], 1

</llo_original>
